<compile_context>
chip_gen: v7x
topology: tpu7x:2x2x1
jax: 0.10.0
libtpu: 0.0.40
codegen_flags: <defaults>
</compile_context>

<pallas_src>
import jax
import jax.numpy as jnp
from jax.experimental import pallas as pl
from jax.experimental.pallas import tpu as pltpu


def logreg_kernel(x_ref, w_ref, b_ref, o_ref):
    # x_ref: (TB, F) VMEM   w_ref: (1, F) VMEM   b_ref: (1, 1) SMEM   o_ref: (1, TB) VMEM
    x = x_ref[...].astype(jnp.float32)      # upcast on VPU (supports bf16 inputs)
    w = w_ref[...].astype(jnp.float32)      # (1, F), broadcasts over rows
    b = b_ref[0, 0]                         # scalar from SMEM

    # VPU multiply + XLU lane reduction (no MXU, no weight transpose), f32 accum.
    z = jnp.sum(x * w, axis=-1) + b         # (TB,) f32

    # exp -> EUP.  Lane-dense store: one (1, TB) row => wide vector stores
    # instead of TB/8 masked single-lane stores.
    o_ref[0, :] = jax.nn.sigmoid(z).astype(o_ref.dtype)


def _round_up(x, m):
    return ((x + m - 1) // m) * m


def _vmem_budget_bytes():
    """Generation-aware scoped-VMEM budget with headroom for weight/out/scratch."""
    try:
        cap = pltpu.get_tpu_info().vmem_capacity_bytes
    except Exception:
        cap = 64 * 1024 * 1024              # conservative fallback: v7x per-TC physical
    return int(min((cap * 3) // 4, 96 * 1024 * 1024))


def _pick_batch_tile(B, F, vmem_limit, itemsize):
    """Row tile sized in bytes using the lane-padded footprint of x."""
    lane_f = _round_up(max(F, 1), 128)                    # lanes pad to 128
    bytes_per_row = lane_f * itemsize
    per_buf_target = min(vmem_limit // 4, 16 * 1024 * 1024)  # x is double-buffered
    tb = max(8, per_buf_target // bytes_per_row)
    if tb >= B:
        return B                                          # single full-dims block
    tb = min(tb, pl.cdiv(B, 2))                           # keep >=2 tiles for megacore
    tb = (tb // 128) * 128 if tb >= 128 else (tb // 8) * 8
    return max(tb, 8)


@jax.jit
def logistic_regression(x, weight, bias):
    """x: (B, F) f32/bf16, weight: (1, F), bias: (1,) -> (B, 1) f32."""
    B, F = x.shape
    vmem_limit = _vmem_budget_bytes()
    tb = _pick_batch_tile(B, F, vmem_limit, x.dtype.itemsize)
    n_tiles = pl.cdiv(B, tb)

    w = weight.astype(jnp.float32)
    b2 = bias.reshape(1, 1).astype(jnp.float32)

    cost = pl.CostEstimate(
        flops=2 * B * F + B,
        transcendentals=B,
        bytes_accessed=B * F * x.dtype.itemsize + F * 4 + 4 + B * 4,
    )

    y = pl.pallas_call(
        logreg_kernel,
        out_shape=jax.ShapeDtypeStruct((n_tiles, tb), jnp.float32),
        grid_spec=pltpu.PrefetchScalarGridSpec(
            num_scalar_prefetch=0,
            grid=(n_tiles,),
            in_specs=[
                pl.BlockSpec((tb, F), lambda i: (i, 0)),            # x: pipelined row tiles
                pl.BlockSpec((1, F), lambda i: (0, 0)),             # weight: resident
                pl.BlockSpec(memory_space=pltpu.MemorySpace.SMEM),  # bias: SMEM scalar
            ],
            out_specs=pl.BlockSpec((1, tb), lambda i: (i, 0)),      # lane-dense slab row
        ),
        compiler_params=pltpu.CompilerParams(
            dimension_semantics=("parallel",),   # shard batch tiles across TCs (v7x)
            vmem_limit_bytes=vmem_limit,
        ),
        cost_estimate=cost,
    )(x, w, b2)

    # Lane-dense slab -> (B, 1).  Rows >= B from the partial last x block are
    # garbage (uninitialized VMEM) and are discarded by this slice.
    return y.reshape(-1)[:B].reshape(B, 1)


if __name__ == "__main__":
    key = jax.random.PRNGKey(0)
    kx, kw, kb = jax.random.split(key, 3)

    B, F = 8, 32  # batch=8, n_input_features=32

    x = jax.random.normal(kx, (B, F), dtype=jnp.float32)
    # Deterministic parameter init (mimics nn.Linear uniform(-1/sqrt(F), 1/sqrt(F)))
    bound = 1.0 / jnp.sqrt(jnp.float32(F))
    weight = jax.random.uniform(kw, (1, F), minval=-bound, maxval=bound, dtype=jnp.float32)
    bias = jax.random.uniform(kb, (1,), minval=-bound, maxval=bound, dtype=jnp.float32)

    y = logistic_regression(x, weight, bias)
    y = jax.block_until_ready(y)

    # Reference check in plain JAX
    y_ref = jax.nn.sigmoid(x @ weight.T + bias)
    assert y.shape == (B, 1)
    assert jnp.allclose(y, y_ref, atol=1e-5, rtol=1e-5)

    print("KERNEL_OK")
</pallas_src>

<mosaic_0001>
module attributes {stable_mosaic.version = 11 : i64} {
  func.func @logreg_kernel(%arg0: i32, %arg1: memref<8x32xf32, #tpu.memory_space<vmem>>, %arg2: memref<1x32xf32, #tpu.memory_space<vmem>>, %arg3: memref<1x1xf32, #tpu.memory_space<smem>>, %arg4: memref<1x8xf32, #tpu.memory_space<vmem>>) attributes {dimension_semantics = [#tpu.dimension_semantics<parallel>], iteration_bounds = array<i64: 1>, scalar_prefetch = 0 : i64, scratch_operands = 0 : i64, tpu.core_type = #tpu.core_type<tc>, window_params = [{transform_indices = @transform_0, window_bounds = array<i64: 8, 32>}, {pipeline_mode = #tpu.pipeline_mode<synchronous>, transform_indices = @transform_1, window_bounds = array<i64: 1, 32>}, {transform_indices = @transform_2, window_bounds = array<i64: 1, 1>}, {transform_indices = @transform_3, window_bounds = array<i64: 1, 8>}]} {
    %c0 = arith.constant 0 : index
    %c0_0 = arith.constant 0 : index
    %0 = vector.load %arg1[%c0, %c0_0] : memref<8x32xf32, #tpu.memory_space<vmem>>, vector<8x32xf32>
    %c0_1 = arith.constant 0 : index
    %c0_2 = arith.constant 0 : index
    %1 = vector.load %arg2[%c0_1, %c0_2] : memref<1x32xf32, #tpu.memory_space<vmem>>, vector<1x32xf32>
    %c0_3 = arith.constant 0 : index
    %c0_4 = arith.constant 0 : index
    %2 = memref.load %arg3[%c0_3, %c0_4] : memref<1x1xf32, #tpu.memory_space<smem>>
    %3 = vector.broadcast %1 : vector<1x32xf32> to vector<8x32xf32>
    %4 = arith.mulf %0, %3 : vector<8x32xf32>
    %cst = arith.constant dense<0.000000e+00> : vector<8xf32>
    %5 = vector.multi_reduction <add>, %4, %cst [1] : vector<8x32xf32> to vector<8xf32>
    %6 = vector.broadcast %2 : f32 to vector<8xf32>
    %7 = arith.addf %5, %6 : vector<8xf32>
    %8 = arith.negf %7 : vector<8xf32>
    %9 = math.exp %8 : vector<8xf32>
    %cst_5 = arith.constant 1.000000e+00 : f32
    %10 = vector.broadcast %cst_5 : f32 to vector<8xf32>
    %11 = arith.addf %10, %9 : vector<8xf32>
    %12 = arith.divf %10, %11 : vector<8xf32>
    %c0_6 = arith.constant 0 : index
    %c0_7 = arith.constant 0 : index
    %13 = vector.load %arg4[%c0_6, %c0_7] : memref<1x8xf32, #tpu.memory_space<vmem>>, vector<1x8xf32>
    %14 = vector.shape_cast %13 : vector<1x8xf32> to vector<8xf32>
    %15 = vector.shape_cast %12 : vector<8xf32> to vector<1x8xf32>
    tpu.vector_store %arg4[%c0_6, %c0_7], %15 {strides = array<i32>} : memref<1x8xf32, #tpu.memory_space<vmem>>, vector<1x8xf32>,
    return
  }
  func.func @transform_0(%arg0: i32) -> (i32, i32) {
    %c0_i32 = arith.constant 0 : i32
    %c0_i32_0 = arith.constant 0 : i32
    return %arg0, %c0_i32 : i32, i32
  }
  func.func @transform_1(%arg0: i32) -> (i32, i32) {
    %c0_i32 = arith.constant 0 : i32
    %c0_i32_0 = arith.constant 0 : i32
    %c0_i32_1 = arith.constant 0 : i32
    return %c0_i32, %c0_i32_0 : i32, i32
  }
  func.func @transform_2(%arg0: i32) -> (i32, i32) {
    %c0_i32 = arith.constant 0 : i32
    %c0_i32_0 = arith.constant 0 : i32
    %c0_i32_1 = arith.constant 0 : i32
    return %c0_i32, %c0_i32_0 : i32, i32
  }
  func.func @transform_3(%arg0: i32) -> (i32, i32) {
    %c0_i32 = arith.constant 0 : i32
    %c0_i32_0 = arith.constant 0 : i32
    return %arg0, %c0_i32 : i32, i32
  }
}

</mosaic_0001>

<llo_original>
// kernel: logistic_regression.1
$region0: #{logistic_regression.1}
  #allocation0 [shape = 'u32[]', space=smem, size = 0x4, offset = 0x4, fixed_abs, tag = 'smem constant byte address 0x4 - core index']
  #allocation1 [shape = 'u32[144,128]{1,0:T(1,128)}', space=vmem, size = 0x12000, scoped, tag = 'internal scratch']
  #allocation2 [shape = 'f32[1,1]{1,0:T(1,128)S(6)}', space=smem, size = 0x200, scoped, tag = 'scoped memory for logistic_regression.1']
  %s0 = inlined_call_operand.hbm [shape: f32[8,32], index: 0, kind: input, shape index: {}]
  %s1 = inlined_call_operand.vmem [shape: f32[1,32], index: 1, kind: input, shape index: {}]
  %s2 = inlined_call_operand.<no memory space> [shape: f32[1,1], index: 2, kind: input, shape index: {}]
  %s3 = inlined_call_operand.hbm [shape: f32[1,8], index: 3, kind: output, shape index: {}]
  %s4 = sld [smem:[#allocation0]]
  $region26: #{logistic_regression.1} parent=0
    _
  %s6 = ssub.s32 1, %s4
  %s7 = scalar_select 0, %s6, %s4
  %8 = sst [smem:[#allocation2]] %s2
  $region1: #{logistic_regression.1} parent=0
    #allocation3 [shape = 'u8[4096]{0}', space=vmem, size = 0x1000, scoped, tag = 'input window, operand 0, single buffered']
    #allocation4 [shape = 's32[1]{0}', space=sflag, size = 0x4, scoped, tag = 'scoped memory for logistic_regression.1']
    #allocation5 [shape = 's32[1]{0}', space=sflag, size = 0x4, scoped, tag = 'scoped memory for logistic_regression.1']
    #allocation6 [shape = 'u8[512]{0}', space=vmem, size = 0x400, scoped, tag = 'output window, operand 0, single buffered']
    %9 = vsyncpa [#allocation4], 0
    %10 = vsyncpa [#allocation5], 0
    // Predicated region
    $region2: #{logistic_regression.1} parent=1 // pred_check
      _
    $region3: #{logistic_regression.1} parent=1 // pred_check_branch
      %12 = sbr.rel (0) target = $region5
    $region4: #{logistic_regression.1} parent=1 // pred_region
      %s14 = ssub.s32 128, 128
      %15 = vsyncadd [#allocation4], %s14
      %s17 = sshll.u32 [#allocation3], 4
      %s18 = int_to_ptr.vmem [resolvable:$true] %s17
      %20 = dma.hbm_to_vmem [thread:$0]  %s0, 128, %s18, [#allocation4]
    $region5: #{logistic_regression.1} parent=1 // pred_fallthru
      _
    // Predicated region
    $region6: #{logistic_regression.1} parent=1 // pred_check
      _
    $region7: #{logistic_regression.1} parent=1 // pred_check_branch
      %22 = sbr.rel (0) target = $region9
    $region8: #{logistic_regression.1} parent=1 // pred_region
      _
    $region9: #{logistic_regression.1} parent=1 // pred_fallthru
      _
    // Predicated region
    $region10: #{logistic_regression.1} parent=1 // pred_check
      _
    $region11: #{logistic_regression.1} parent=1 // pred_check_branch
      %24 = sbr.rel (0) target = $region13
    $region12: #{logistic_regression.1} parent=1 // pred_region
      _
    $region13: #{logistic_regression.1} parent=1 // pred_fallthru
      _
    // Predicated region
    $region14: #{logistic_regression.1} parent=1 // pred_check
      _
    $region15: #{logistic_regression.1} parent=1 // pred_check_branch
      %26 = sbr.rel (0) target = $region17
    $region16: #{logistic_regression.1} parent=1 // pred_region
      %27 = dma.done [#allocation4], 128
    $region17: #{logistic_regression.1} parent=1 // pred_fallthru
      _
    %v28 = vld [vmem:[#allocation3] sm:$0xff]
    %v29 = vld [vmem:[%s1] sm:$0x1]
    %s30 = sld [smem:[#allocation2]]
    %v32 = vlaneseq
    %v33 = vshrl.u32 %v32, 7
    %v34 = vsub.s32 0, %v33
    %v35 = vrot.slane %v29, %v34
    %v37 = vmul.f32 %v28, %v35
    %vm38 = vcmask 261120
    %v39 = vsel %vm38, %v37, 0.0
    %40 = vadd.xlane.f32.xlu0 %v39
    %v41 = vpop.xlane.xlu0 %40
    %v42 = vstv %s30
    %v43 = vadd.f32 %v41, %v42
    %v44 = vxor.u32 %v43, 2147483648
    %v45 = vmul.f32 %v44, 1.442695
    %v46 = vpow.pop %v45
    %v47 = vadd.f32 %v46, 1.0
    %v48 = vrcp.pop %v47
    %v49 = vmul.f32 1.0, %v48
    %v51 = vlaneseq
    %v52 = vand.u32 %v51, 127
    %v53 = vlaneseq
    %v54 = vshrl.u32 %v53, 7
    %v55 = vsub.s32 %v52, %v54
    %v56 = vrot.slane %v49, %v55
    %vm58 = vcmask 57344
    %59 = vst.msk [vmem:[#allocation6] sm:$0x1] %vm58, %v56
    // Predicated region
    $region18: #{logistic_regression.1} parent=1 // pred_check
      _
    $region19: #{logistic_regression.1} parent=1 // pred_check_branch
      %61 = sbr.rel (0) target = $region21
    $region20: #{logistic_regression.1} parent=1 // pred_region
      %s63 = ssub.s32 16, 16
      %64 = vsyncadd [#allocation5], %s63
      %s66 = sshll.u32 [#allocation6], 4
      %s67 = int_to_ptr.vmem [resolvable:$true] %s66
      %69 = dma.vmem_to_hbm [thread:$0]  %s67, 16, %s3, [#allocation5]
    $region21: #{logistic_regression.1} parent=1 // pred_fallthru
      _
    // Predicated region
    $region22: #{logistic_regression.1} parent=1 // pred_check
      _
    $region23: #{logistic_regression.1} parent=1 // pred_check_branch
      %71 = sbr.rel (0) target = $region25
    $region24: #{logistic_regression.1} parent=1 // pred_region
      %72 = dma.done [#allocation5], 16
    $region25: #{logistic_regression.1} parent=1 // pred_fallthru
      _
    %73 = vsyncpa [#allocation4], 1
    %74 = vsyncpa [#allocation5], 1

</llo_original>
